<compile_context>
chip_gen: v7x
topology: tpu7x:2x2x1
jax: 0.10.0
libtpu: 0.0.40
codegen_flags: <defaults>
</compile_context>

<pallas_src>
import functools

import jax
import jax.numpy as jnp
import numpy as np
from jax.experimental import pallas as pl
from jax.experimental.pallas import tpu as pltpu


def _round_up(x, m):
    return ((x + m - 1) // m) * m


def _noisy_topk_router_kernel(x_ref, wt_ref, b_ref, noise_ref, out_ref, idx_ref,
                              *, top_k, n_experts):
    E = n_experts

    # One fused MXU matmul, tokens on the lane axis:
    #   (2E, D) · (tm, D)^T  ->  (2E, tm), f32 accumulate, + (2E, 1) bias.
    both = jax.lax.dot_general(
        wt_ref[...], x_ref[...],
        dimension_numbers=(((1,), (1,)), ((), ())),
        preferred_element_type=jnp.float32) + b_ref[...]
    logits = both[:E, :]          # (E, tm)
    noise_logits = both[E:, :]    # (E, tm)

    # Numerically-stable softplus: max(x,0) + log1p(exp(-|x|))  (EUP/VPU, f32).
    softplus = jnp.maximum(noise_logits, 0.0) + jnp.log1p(
        jnp.exp(-jnp.abs(noise_logits)))
    noisy = logits + noise_ref[...].astype(jnp.float32) * softplus   # (E, tm)

    tm = noisy.shape[1]
    e_iota = jax.lax.broadcasted_iota(jnp.int32, (E, tm), 0)
    neg_inf = jnp.float32(-jnp.inf)

    # Iterative top-k (K small & static): extract max, record index, mask out.
    # Lowest-index-first tie-breaking matches jax.lax.top_k / torch.topk.
    work = noisy
    selected = jnp.zeros((E, tm), dtype=jnp.bool_)
    idx_rows = []
    softmax_max = None
    for k in range(top_k):
        max_val = jnp.max(work, axis=0, keepdims=True)               # (1, tm)
        if k == 0:
            softmax_max = max_val  # global max == max of the selected set
        is_max = work == max_val
        idx = jnp.min(jnp.where(is_max, e_iota, E), axis=0, keepdims=True)
        idx_rows.append(idx)
        sel = e_iota == idx                                          # (E, tm)
        selected = jnp.logical_or(selected, sel)
        work = jnp.where(sel, neg_inf, work)

    # Single lane-dense store of all K index rows.
    idx_ref[...] = jnp.concatenate(idx_rows, axis=0)

    # Scatter top-k values into -inf, softmax over E (reuse iteration-0 max).
    sparse = jnp.where(selected, noisy, neg_inf)
    p = jnp.exp(sparse - softmax_max)
    denom = jnp.sum(p, axis=0, keepdims=True)                        # (1, tm)
    out_ref[...] = (p * pl.reciprocal(denom, approx=False)).astype(out_ref.dtype)


def noisy_topk_router(x_BLD, w_route_DE, b_route_E, w_noise_DE, b_noise_E,
                      noise_BLE, top_k, *, tm=2048):
    B, L, D = x_BLD.shape
    E = w_route_DE.shape[1]
    assert 0 < top_k <= E, "top_k must be in (0, n_experts]"
    N = B * L

    x_ND = x_BLD.reshape(N, D)

    # Fused, pre-transposed projection: (2E, D) weight and (2E, 1) bias.
    wt_fused = jnp.concatenate([w_route_DE.T, w_noise_DE.T], axis=0)
    b_fused = jnp.concatenate([b_route_E, b_noise_E]).reshape(2 * E, 1)

    x_bytes = jnp.dtype(x_BLD.dtype).itemsize
    noise_bytes = jnp.dtype(noise_BLE.dtype).itemsize
    w_bytes = jnp.dtype(wt_fused.dtype).itemsize
    out_bytes = x_bytes

    def _need(t):
        # Double-buffered streamed tiles + double-buffered grid-invariant
        # weight/bias + f32/bool epilogue intermediates on (E, t)/(2E, t).
        return (2 * (t * D * x_bytes + E * t * noise_bytes
                     + E * t * out_bytes + top_k * t * 4)
                + 2 * (2 * E * D * w_bytes + 2 * E * w_bytes)
                + (10 * E + 16) * t * 4)

    # Per-generation VMEM budget: v5e/v6e have 128 MiB, v7x 64 MiB per core.
    try:
        vmem_cap = int(pltpu.get_tpu_info().vmem_capacity_bytes)
    except Exception:
        vmem_cap = 64 * 1024 * 1024
    if vmem_cap >= 96 * 1024 * 1024:
        budget = min(96 * 1024 * 1024, int(0.70 * vmem_cap))
    else:
        budget = int(0.45 * vmem_cap)

    # Token tile: multiple of 128 (lane axis), as big as the budget allows,
    # capped so the grid has >= 4 steps (megacore/TC sharding on v7x).
    tm_eff = _round_up(max(min(tm, N), 1), 128)
    tm_eff = min(tm_eff, max(128, _round_up(-(-N // 4), 128)))
    while tm_eff > 128 and _need(tm_eff) > budget:
        tm_eff = max(128, _round_up(tm_eff // 2, 128))

    N_pad = _round_up(N, tm_eff)
    grid = (N_pad // tm_eff,)

    # x is streamed unpadded (partial edge-block read on the last tile); only
    # the small lane-axis noise array is padded so all stores are full-width.
    noise_EN = jnp.pad(noise_BLE.reshape(N, E).T, ((0, 0), (0, N_pad - N)))

    kernel = functools.partial(_noisy_topk_router_kernel,
                               top_k=top_k, n_experts=E)

    cost = pl.CostEstimate(
        flops=2 * N_pad * D * 2 * E,
        transcendentals=3 * N_pad * E,
        bytes_accessed=(N * D * x_bytes + 2 * E * D * w_bytes + 2 * E * w_bytes
                        + N_pad * E * noise_bytes + N_pad * E * out_bytes
                        + N_pad * top_k * 4),
    )
    vmem_limit = int(min(int(0.80 * vmem_cap),
                         max(32 * 1024 * 1024, int(_need(tm_eff) * 1.3))))

    router_EN, idx_KN = pl.pallas_call(
        kernel,
        out_shape=(
            jax.ShapeDtypeStruct((E, N_pad), x_BLD.dtype),
            jax.ShapeDtypeStruct((top_k, N_pad), jnp.int32),
        ),
        grid_spec=pltpu.PrefetchScalarGridSpec(
            num_scalar_prefetch=0,
            grid=grid,
            in_specs=[
                pl.BlockSpec((tm_eff, D), lambda i: (i, 0)),     # x tile (rows)
                pl.BlockSpec((2 * E, D), lambda i: (0, 0)),      # fused W^T
                pl.BlockSpec((2 * E, 1), lambda i: (0, 0)),      # fused bias
                pl.BlockSpec((E, tm_eff), lambda i: (0, i)),     # noise (lanes)
            ],
            out_specs=[
                pl.BlockSpec((E, tm_eff), lambda i: (0, i)),     # router probs
                pl.BlockSpec((top_k, tm_eff), lambda i: (0, i)),  # expert ids
            ],
        ),
        compiler_params=pltpu.CompilerParams(
            dimension_semantics=("parallel",),
            vmem_limit_bytes=vmem_limit,
        ),
        cost_estimate=cost,
    )(x_ND, wt_fused, b_fused, noise_EN)

    # One cheap XLA transpose back to token-major after slicing off the pad.
    router_NE = router_EN[:, :N].T
    idx_NK = idx_KN[:, :N].T
    return router_NE.reshape(B, L, E), idx_NK.reshape(B, L, top_k)


def _reference(x_BLD, w_route_DE, b_route_E, w_noise_DE, b_noise_E, noise_BLE, top_k):
    logits = x_BLD @ w_route_DE + b_route_E
    noise_logits = x_BLD @ w_noise_DE + b_noise_E
    noisy = logits + noise_BLE * jax.nn.softplus(noise_logits)
    _, idx = jax.lax.top_k(noisy, top_k)
    E = noisy.shape[-1]
    mask = jnp.any(jax.nn.one_hot(idx, E, dtype=jnp.bool_), axis=-2)
    sparse = jnp.where(mask, noisy, -jnp.inf)
    return jax.nn.softmax(sparse, axis=-1), idx


def _run_case(B, L, D, E, K, seed):
    key = jax.random.PRNGKey(seed)
    k_x, k_wr, k_br, k_wn, k_bn, k_noise = jax.random.split(key, 6)

    scale = 1.0 / np.sqrt(D)
    x_BLD = jax.random.normal(k_x, (B, L, D), dtype=jnp.float32)
    w_route_DE = jax.random.normal(k_wr, (D, E), dtype=jnp.float32) * scale
    b_route_E = jax.random.normal(k_br, (E,), dtype=jnp.float32) * scale
    w_noise_DE = jax.random.normal(k_wn, (D, E), dtype=jnp.float32) * scale
    b_noise_E = jax.random.normal(k_bn, (E,), dtype=jnp.float32) * scale
    # Deterministic stand-in for torch.randn_like(logits).
    noise_BLE = jax.random.normal(k_noise, (B, L, E), dtype=jnp.float32)

    router_BLE, idx_BLK = noisy_topk_router(
        x_BLD, w_route_DE, b_route_E, w_noise_DE, b_noise_E, noise_BLE, K)
    router_BLE = jax.block_until_ready(router_BLE)
    idx_BLK = jax.block_until_ready(idx_BLK)

    ref_router, ref_idx = _reference(
        x_BLD, w_route_DE, b_route_E, w_noise_DE, b_noise_E, noise_BLE, K)

    assert router_BLE.shape == (B, L, E) and idx_BLK.shape == (B, L, K)
    np.testing.assert_allclose(np.asarray(router_BLE), np.asarray(ref_router),
                               rtol=1e-5, atol=1e-5)
    np.testing.assert_array_equal(np.asarray(idx_BLK), np.asarray(ref_idx))


if __name__ == "__main__":
    # Small canonical case (N = 16 tokens).
    _run_case(B=2, L=8, D=32, E=8, K=2, seed=0)
    # Ragged token count to exercise the edge-block / slice-back path (N = 10).
    _run_case(B=2, L=5, D=32, E=8, K=2, seed=1)
    print("KERNEL_OK")
</pallas_src>

<mosaic_0001>
module attributes {stable_mosaic.version = 11 : i64} {
  func.func @_noisy_topk_router_kernel(%arg0: i32, %arg1: memref<128x32xf32, #tpu.memory_space<vmem>>, %arg2: memref<16x32xf32, #tpu.memory_space<vmem>>, %arg3: memref<16x1xf32, #tpu.memory_space<vmem>>, %arg4: memref<8x128xf32, #tpu.memory_space<vmem>>, %arg5: memref<8x128xf32, #tpu.memory_space<vmem>>, %arg6: memref<2x128xi32, #tpu.memory_space<vmem>>) attributes {dimension_semantics = [#tpu.dimension_semantics<parallel>], iteration_bounds = array<i64: 1>, scalar_prefetch = 0 : i64, scratch_operands = 0 : i64, tpu.core_type = #tpu.core_type<tc>, window_params = [{transform_indices = @transform_0, window_bounds = array<i64: 128, 32>}, {pipeline_mode = #tpu.pipeline_mode<synchronous>, transform_indices = @transform_1, window_bounds = array<i64: 16, 32>}, {pipeline_mode = #tpu.pipeline_mode<synchronous>, transform_indices = @transform_2, window_bounds = array<i64: 16, 1>}, {transform_indices = @transform_3, window_bounds = array<i64: 8, 128>}, {transform_indices = @transform_4, window_bounds = array<i64: 8, 128>}, {transform_indices = @transform_5, window_bounds = array<i64: 2, 128>}]} {
    %c0 = arith.constant 0 : index
    %c0_0 = arith.constant 0 : index
    %0 = vector.load %arg2[%c0, %c0_0] : memref<16x32xf32, #tpu.memory_space<vmem>>, vector<16x32xf32>
    %c0_1 = arith.constant 0 : index
    %c0_2 = arith.constant 0 : index
    %1 = vector.load %arg1[%c0_1, %c0_2] : memref<128x32xf32, #tpu.memory_space<vmem>>, vector<128x32xf32>
    %cst = arith.constant dense<0.000000e+00> : vector<16x128xf32>
    %2 = tpu.matmul %0, %1, %cst {dimension_numbers = #tpu.dot_dimension_numbers<[1], [1], [0], [0], [0, 0, 1, 0], [], []>} : vector<16x32xf32>, vector<128x32xf32>, vector<16x128xf32> -> vector<16x128xf32>
    %c0_3 = arith.constant 0 : index
    %c0_4 = arith.constant 0 : index
    %3 = vector.load %arg3[%c0_3, %c0_4] : memref<16x1xf32, #tpu.memory_space<vmem>>, vector<16x1xf32>
    %4 = vector.broadcast %3 : vector<16x1xf32> to vector<16x128xf32>
    %5 = arith.addf %2, %4 : vector<16x128xf32>
    %6 = vector.extract_strided_slice %5 {offsets = [0, 0], sizes = [8, 128], strides = [1, 1]} : vector<16x128xf32> to vector<8x128xf32>
    %7 = vector.extract_strided_slice %5 {offsets = [8, 0], sizes = [8, 128], strides = [1, 1]} : vector<16x128xf32> to vector<8x128xf32>
    %cst_5 = arith.constant 0.000000e+00 : f32
    %8 = vector.broadcast %cst_5 : f32 to vector<8x128xf32>
    %9 = arith.maximumf %7, %8 : vector<8x128xf32>
    %10 = math.absf %7 : vector<8x128xf32>
    %cst_6 = arith.constant 0.000000e+00 : f32
    %11 = vector.broadcast %cst_6 : f32 to vector<8x128xf32>
    %12 = arith.subf %11, %10 : vector<8x128xf32>
    %13 = math.exp %12 : vector<8x128xf32>
    %14 = math.log1p %13 : vector<8x128xf32>
    %15 = arith.addf %9, %14 : vector<8x128xf32>
    %c0_7 = arith.constant 0 : index
    %c0_8 = arith.constant 0 : index
    %16 = vector.load %arg4[%c0_7, %c0_8] : memref<8x128xf32, #tpu.memory_space<vmem>>, vector<8x128xf32>
    %17 = arith.mulf %16, %15 : vector<8x128xf32>
    %18 = arith.addf %6, %17 : vector<8x128xf32>
    %19 = tpu.iota {dimensions = array<i32: 0>} : vector<8x128xi32>
    %false = arith.constant false
    %20 = vector.broadcast %false : i1 to vector<8x128xi1>
    %cst_9 = arith.constant dense<0xFF800000> : vector<128xf32>
    %21 = vector.multi_reduction <maximumf>, %18, %cst_9 [0] : vector<8x128xf32> to vector<128xf32>
    %22 = vector.shape_cast %21 : vector<128xf32> to vector<1x128xf32>
    %23 = vector.broadcast %22 : vector<1x128xf32> to vector<8x128xf32>
    %24 = arith.cmpf oeq, %18, %23 : vector<8x128xf32>
    %c8_i32 = arith.constant 8 : i32
    %25 = vector.broadcast %c8_i32 : i32 to vector<8x128xi32>
    %26 = arith.select %24, %19, %25 : vector<8x128xi1>, vector<8x128xi32>
    %cst_10 = arith.constant dense<2147483647> : vector<128xi32>
    %27 = vector.multi_reduction <minsi>, %26, %cst_10 [0] : vector<8x128xi32> to vector<128xi32>
    %28 = vector.shape_cast %27 : vector<128xi32> to vector<1x128xi32>
    %29 = vector.broadcast %28 : vector<1x128xi32> to vector<8x128xi32>
    %30 = arith.cmpi eq, %19, %29 : vector<8x128xi32>
    %31 = arith.ori %20, %30 : vector<8x128xi1>
    %cst_11 = arith.constant 0xFF800000 : f32
    %32 = vector.broadcast %cst_11 : f32 to vector<8x128xf32>
    %33 = arith.select %30, %32, %18 : vector<8x128xi1>, vector<8x128xf32>
    %cst_12 = arith.constant dense<0xFF800000> : vector<128xf32>
    %34 = vector.multi_reduction <maximumf>, %33, %cst_12 [0] : vector<8x128xf32> to vector<128xf32>
    %35 = vector.shape_cast %34 : vector<128xf32> to vector<1x128xf32>
    %36 = vector.broadcast %35 : vector<1x128xf32> to vector<8x128xf32>
    %37 = arith.cmpf oeq, %33, %36 : vector<8x128xf32>
    %c8_i32_13 = arith.constant 8 : i32
    %38 = vector.broadcast %c8_i32_13 : i32 to vector<8x128xi32>
    %39 = arith.select %37, %19, %38 : vector<8x128xi1>, vector<8x128xi32>
    %cst_14 = arith.constant dense<2147483647> : vector<128xi32>
    %40 = vector.multi_reduction <minsi>, %39, %cst_14 [0] : vector<8x128xi32> to vector<128xi32>
    %41 = vector.shape_cast %40 : vector<128xi32> to vector<1x128xi32>
    %42 = vector.broadcast %41 : vector<1x128xi32> to vector<8x128xi32>
    %43 = arith.cmpi eq, %19, %42 : vector<8x128xi32>
    %44 = arith.ori %31, %43 : vector<8x128xi1>
    %45 = tpu.concatenate %28, %41 in 0 : vector<1x128xi32>, vector<1x128xi32> -> vector<2x128xi32>
    %c0_15 = arith.constant 0 : index
    %c0_16 = arith.constant 0 : index
    %46 = vector.load %arg6[%c0_15, %c0_16] : memref<2x128xi32, #tpu.memory_space<vmem>>, vector<2x128xi32>
    tpu.vector_store %arg6[%c0_15, %c0_16], %45 {strides = array<i32>} : memref<2x128xi32, #tpu.memory_space<vmem>>, vector<2x128xi32>,
    %cst_17 = arith.constant 0xFF800000 : f32
    %47 = vector.broadcast %cst_17 : f32 to vector<8x128xf32>
    %48 = arith.select %44, %18, %47 : vector<8x128xi1>, vector<8x128xf32>
    %49 = vector.broadcast %22 : vector<1x128xf32> to vector<8x128xf32>
    %50 = arith.subf %48, %49 : vector<8x128xf32>
    %51 = math.exp %50 : vector<8x128xf32>
    %cst_18 = arith.constant dense<0.000000e+00> : vector<128xf32>
    %52 = vector.multi_reduction <add>, %51, %cst_18 [0] : vector<8x128xf32> to vector<128xf32>
    %53 = vector.shape_cast %52 : vector<128xf32> to vector<1x128xf32>
    %54 = tpu.reciprocal %53 : vector<1x128xf32> -> vector<1x128xf32>
    %55 = vector.broadcast %54 : vector<1x128xf32> to vector<8x128xf32>
    %56 = arith.mulf %51, %55 : vector<8x128xf32>
    %c0_19 = arith.constant 0 : index
    %c0_20 = arith.constant 0 : index
    %57 = vector.load %arg5[%c0_19, %c0_20] : memref<8x128xf32, #tpu.memory_space<vmem>>, vector<8x128xf32>
    tpu.vector_store %arg5[%c0_19, %c0_20], %56 {strides = array<i32>} : memref<8x128xf32, #tpu.memory_space<vmem>>, vector<8x128xf32>,
    return
  }
  func.func @transform_0(%arg0: i32) -> (i32, i32) {
    %c0_i32 = arith.constant 0 : i32
    %c0_i32_0 = arith.constant 0 : i32
    return %arg0, %c0_i32 : i32, i32
  }
  func.func @transform_1(%arg0: i32) -> (i32, i32) {
    %c0_i32 = arith.constant 0 : i32
    %c0_i32_0 = arith.constant 0 : i32
    %c0_i32_1 = arith.constant 0 : i32
    return %c0_i32, %c0_i32_0 : i32, i32
  }
  func.func @transform_2(%arg0: i32) -> (i32, i32) {
    %c0_i32 = arith.constant 0 : i32
    %c0_i32_0 = arith.constant 0 : i32
    %c0_i32_1 = arith.constant 0 : i32
    return %c0_i32, %c0_i32_0 : i32, i32
  }
  func.func @transform_3(%arg0: i32) -> (i32, i32) {
    %c0_i32 = arith.constant 0 : i32
    %c0_i32_0 = arith.constant 0 : i32
    return %c0_i32, %arg0 : i32, i32
  }
  func.func @transform_4(%arg0: i32) -> (i32, i32) {
    %c0_i32 = arith.constant 0 : i32
    %c0_i32_0 = arith.constant 0 : i32
    return %c0_i32, %arg0 : i32, i32
  }
  func.func @transform_5(%arg0: i32) -> (i32, i32) {
    %c0_i32 = arith.constant 0 : i32
    %c0_i32_0 = arith.constant 0 : i32
    return %c0_i32, %arg0 : i32, i32
  }
}

</mosaic_0001>

<llo_original>
// kernel: tpu_custom_call.1
$region0: #{tpu_custom_call.1}
  #allocation0 [shape = 'u32[]', space=smem, size = 0x4, offset = 0x4, fixed_abs, tag = 'smem constant byte address 0x4 - core index']
  #allocation1 [shape = 'u32[144,128]{1,0:T(1,128)}', space=vmem, size = 0x12000, scoped, tag = 'internal scratch']
  %s0 = inlined_call_operand.vmem [shape: f32[16,32], index: 0, kind: input, shape index: {}]
  %s1 = inlined_call_operand.hbm [shape: f32[16,32], index: 1, kind: input, shape index: {}]
  %s2 = inlined_call_operand.vmem [shape: f32[16,1], index: 2, kind: input, shape index: {}]
  %s3 = inlined_call_operand.vmem [shape: f32[8,128], index: 3, kind: input, shape index: {}]
  %s4 = inlined_call_operand.hbm [shape: f32[8,128], index: 4, kind: output, shape index: {0}]
  %s5 = inlined_call_operand.hbm [shape: s32[2,128], index: 5, kind: output, shape index: {1}]
  %6 = xla_tuple %s4, %s5
  %s7 = sld [smem:[#allocation0]]
  $region38: #{tpu_custom_call.1} parent=0
    _
  %s9 = ssub.s32 1, %s7
  %s10 = scalar_select 0, %s9, %s7
  $region1: #{tpu_custom_call.1} parent=0
    #allocation2 [shape = 'u8[8192]{0}', space=vmem, size = 0x2000, scoped, tag = 'input window, operand 1, single buffered']
    #allocation3 [shape = 's32[1]{0}', space=sflag, size = 0x4, scoped, tag = 'scoped memory for tpu_custom_call.1']
    #allocation4 [shape = 's32[1]{0}', space=sflag, size = 0x4, scoped, tag = 'scoped memory for tpu_custom_call.1']
    #allocation5 [shape = 'u8[4096]{0}', space=vmem, size = 0x1000, scoped, tag = 'output window, operand 0, single buffered']
    #allocation6 [shape = 'u8[1024]{0}', space=vmem, size = 0x400, scoped, tag = 'output window, operand 1, single buffered']
    #allocation7 [shape = 's32[1]{0}', space=sflag, size = 0x4, scoped, tag = 'scoped memory for tpu_custom_call.1']
    %11 = vsyncpa [#allocation3], 0
    %12 = vsyncpa [#allocation4], 0
    %13 = vsyncpa [#allocation7], 0
    // Predicated region
    $region2: #{tpu_custom_call.1} parent=1 // pred_check
      _
    $region3: #{tpu_custom_call.1} parent=1 // pred_check_branch
      %15 = sbr.rel (0) target = $region5
    $region4: #{tpu_custom_call.1} parent=1 // pred_region
      _
    $region5: #{tpu_custom_call.1} parent=1 // pred_fallthru
      _
    // Predicated region
    $region6: #{tpu_custom_call.1} parent=1 // pred_check
      _
    $region7: #{tpu_custom_call.1} parent=1 // pred_check_branch
      %17 = sbr.rel (0) target = $region9
    $region8: #{tpu_custom_call.1} parent=1 // pred_region
      %s19 = ssub.s32 256, 256
      %20 = vsyncadd [#allocation3], %s19
      %s21 = sshll.u32 [#allocation2], 4
      %s22 = int_to_ptr.vmem [resolvable:$true] %s21
      %27 = dma.hbm_to_vmem [thread:$0]  %s1, 256, %s22, [#allocation3], 128, 128, 8
    $region9: #{tpu_custom_call.1} parent=1 // pred_fallthru
      _
    // Predicated region
    $region10: #{tpu_custom_call.1} parent=1 // pred_check
      _
    $region11: #{tpu_custom_call.1} parent=1 // pred_check_branch
      %29 = sbr.rel (0) target = $region13
    $region12: #{tpu_custom_call.1} parent=1 // pred_region
      _
    $region13: #{tpu_custom_call.1} parent=1 // pred_fallthru
      _
    // Predicated region
    $region14: #{tpu_custom_call.1} parent=1 // pred_check
      _
    $region15: #{tpu_custom_call.1} parent=1 // pred_check_branch
      %31 = sbr.rel (0) target = $region17
    $region16: #{tpu_custom_call.1} parent=1 // pred_region
      _
    $region17: #{tpu_custom_call.1} parent=1 // pred_fallthru
      _
    // Predicated region
    $region18: #{tpu_custom_call.1} parent=1 // pred_check
      _
    $region19: #{tpu_custom_call.1} parent=1 // pred_check_branch
      %33 = sbr.rel (0) target = $region21
    $region20: #{tpu_custom_call.1} parent=1 // pred_region
      %34 = dma.done [#allocation3], 256
    $region21: #{tpu_custom_call.1} parent=1 // pred_fallthru
      _
    %v35 = vld [vmem:[#allocation2] sm:$0xff]
    %v36 = vld [vmem:[#allocation2 + $0x8] sm:$0xff]
    %v37 = vld [vmem:[%s0] sm:$0xff]
    %v38 = vld [vmem:[%s0 + $0x8] sm:$0xff]
    %v39 = vld [vmem:[%s0 + $0x10] sm:$0xff]
    %v40 = vld [vmem:[%s0 + $0x18] sm:$0xff]
    %v41 = vld [vmem:[%s0 + $0x20] sm:$0xff]
    %v42 = vld [vmem:[%s0 + $0x28] sm:$0xff]
    %v43 = vld [vmem:[%s0 + $0x30] sm:$0xff]
    %v44 = vld [vmem:[%s0 + $0x38] sm:$0xff]
    %v45 = vld [vmem:[%s0 + $0x40] sm:$0xff]
    %v46 = vld [vmem:[%s0 + $0x48] sm:$0xff]
    %v47 = vld [vmem:[%s0 + $0x50] sm:$0xff]
    %v48 = vld [vmem:[%s0 + $0x58] sm:$0xff]
    %v49 = vld [vmem:[%s0 + $0x60] sm:$0xff]
    %v50 = vld [vmem:[%s0 + $0x68] sm:$0xff]
    %v51 = vld [vmem:[%s0 + $0x70] sm:$0xff]
    %v52 = vld [vmem:[%s0 + $0x78] sm:$0xff]
    %v53 = vld [vmem:[%s2] sm:$0xff]
    %v54 = vld [vmem:[%s2 + $0x8] sm:$0xff]
    %56 = vset.pattern.permute.xlu0 0
    %57 = vperm.xlu0 %56, %v53
    %v58 = vpop.permute.xlu0 %57
    %61 = vset.pattern.permute.xlu0 0
    %62 = vperm.xlu0 %61, %v54
    %v63 = vpop.permute.xlu0 %62
    %vm65 = vcmask 261120
    %v67 = vsel %vm65, %v35, 0
    %v70 = vsel %vm65, %v36, 0
    %v73 = vsel %vm65, %v37, 0
    %v76 = vsel %vm65, %v38, 0
    %v79 = vsel %vm65, %v39, 0
    %v82 = vsel %vm65, %v40, 0
    %v85 = vsel %vm65, %v41, 0
    %v88 = vsel %vm65, %v42, 0
    %v91 = vsel %vm65, %v43, 0
    %v94 = vsel %vm65, %v44, 0
    %v97 = vsel %vm65, %v45, 0
    %v100 = vsel %vm65, %v46, 0
    %v103 = vsel %vm65, %v47, 0
    %v106 = vsel %vm65, %v48, 0
    %v109 = vsel %vm65, %v49, 0
    %v112 = vsel %vm65, %v50, 0
    %v115 = vsel %vm65, %v51, 0
    %v118 = vsel %vm65, %v52, 0
    %120 = vmatprep.subr.mxu0 0.0
    %121 = vmatpush1.xpose.msra.mxu0 %v73
    %122 = vmatprep.subr.mxu0 0.0
    %123 = vmatpush1.xpose.msra.mxu0 %v76
    %124 = vmatprep.subr.mxu0 0.0
    %125 = vmatpush1.xpose.msra.mxu0 %v79
    %126 = vmatprep.subr.mxu0 0.0
    %127 = vmatpush1.xpose.msra.mxu0 %v82
    %128 = vmatprep.subr.mxu0 0.0
    %129 = vmatpush1.xpose.msra.mxu0 %v85
    %130 = vmatprep.subr.mxu0 0.0
    %131 = vmatpush1.xpose.msra.mxu0 %v88
    %132 = vmatprep.subr.mxu0 0.0
    %133 = vmatpush1.xpose.msra.mxu0 %v91
    %134 = vmatprep.subr.mxu0 0.0
    %135 = vmatpush1.xpose.msra.mxu0 %v94
    %136 = vmatprep.subr.mxu0 0.0
    %137 = vmatpush1.xpose.msra.mxu0 %v97
    %138 = vmatprep.subr.mxu0 0.0
    %139 = vmatpush1.xpose.msra.mxu0 %v100
    %140 = vmatprep.subr.mxu0 0.0
    %141 = vmatpush1.xpose.msra.mxu0 %v103
    %142 = vmatprep.subr.mxu0 0.0
    %143 = vmatpush1.xpose.msra.mxu0 %v106
    %144 = vmatprep.subr.mxu0 0.0
    %145 = vmatpush1.xpose.msra.mxu0 %v109
    %146 = vmatprep.subr.mxu0 0.0
    %147 = vmatpush1.xpose.msra.mxu0 %v112
    %148 = vmatprep.subr.mxu0 0.0
    %149 = vmatpush1.xpose.msra.mxu0 %v115
    %150 = vmatprep.subr.mxu0 0.0
    %151 = vmatpush1.xpose.msra.mxu0 %v118
    %152 = vmatprep.subr.mxu0 0.0
    %153 = vmatpush1.xpose.msra.mxu0 0.0
    %154 = vmatprep.subr.mxu0 0.0
    %155 = vmatpush1.xpose.msra.mxu0 0.0
    %156 = vmatprep.subr.mxu0 0.0
    %157 = vmatpush1.xpose.msra.mxu0 0.0
    %158 = vmatprep.subr.mxu0 0.0
    %159 = vmatpush1.xpose.msra.mxu0 0.0
    %160 = vmatprep.subr.mxu0 0.0
    %161 = vmatpush1.xpose.msra.mxu0 0.0
    %162 = vmatprep.subr.mxu0 0.0
    %163 = vmatpush1.xpose.msra.mxu0 0.0
    %164 = vmatprep.subr.mxu0 0.0
    %165 = vmatpush1.xpose.msra.mxu0 0.0
    %166 = vmatprep.subr.mxu0 0.0
    %167 = vmatpush1.xpose.msra.mxu0 0.0
    %168 = vmatprep.subr.mxu0 0.0
    %169 = vmatpush1.xpose.msra.mxu0 0.0
    %170 = vmatprep.subr.mxu0 0.0
    %171 = vmatpush1.xpose.msra.mxu0 0.0
    %172 = vmatprep.subr.mxu0 0.0
    %173 = vmatpush1.xpose.msra.mxu0 0.0
    %174 = vmatprep.subr.mxu0 0.0
    %175 = vmatpush1.xpose.msra.mxu0 0.0
    %176 = vmatprep.subr.mxu0 0.0
    %177 = vmatpush1.xpose.msra.mxu0 0.0
    %178 = vmatprep.subr.mxu0 0.0
    %179 = vmatpush1.xpose.msra.mxu0 0.0
    %180 = vmatprep.subr.mxu0 0.0
    %181 = vmatpush1.xpose.msra.mxu0 0.0
    %182 = vmatprep.subr.mxu0 0.0
    %183 = vmatpush1.xpose.msra.mxu0 0.0
    %184 = vmatprep.mubr.f32.mxu0 0.0
    %185 = vmatmul.mubr.f32.gmra.mrb[0].mxu0 %v67
    %v186 = vpop.f32.mrb[0].mxu0
    %v187 = vadd.f32 %v58, %v186
    %v188 = vpop.f32.mrb[0].mxu0
    %189 = vmatprep.mubr.f32.mxu0 0.0
    %190 = vmatmul.mubr.f32.gmra.mrb[0].mxu0 %v70
    %v191 = vpop.f32.mrb[0].mxu0
    %v192 = vadd.f32 %v63, %v191
    %v193 = vpop.f32.mrb[0].mxu0
    %194 = vdwg.mxu0
    %v195 = vmax.f32 %v192, 0.0
    %v196 = vand.u32 2147483647, %v192
    %v197 = vsub.f32 0.0, %v196
    %v198 = vmul.f32 %v197, 1.442695
    %v199 = vpow.pop %v198
    %v200 = vadd.f32 %v199, 1.0
    %v201 = vlog2.pop %v200
    %v202 = vmul.f32 %v201, 0.6931472
    %v203 = vmul.f32 -0.5, %v199
    %v204 = vadd.f32 %v203, 1.0
    %v205 = vmul.f32 %v204, %v199
    %v206 = vand.u32 2147483647, %v199
    %vm207 = vcmp.lt.f32.partialorder %v206, 0.0004427343
    %v208 = vsel %vm207, %v205, %v202
    %v209 = vadd.f32 %v195, %v208
    %v210 = vld [vmem:[%s3] sm:$0xff]
    %v211 = vmul.f32 %v210, %v209
    %v212 = vadd.f32 %v187, %v211
    %v213 = vlaneseq
    %v214 = vshrl.u32 %v213, 7
    %v215 = vrot.slane %v212, 4
    %v216 = vmax.f32 %v212, %v215
    %v217 = vrot.slane %v216, 2
    %v218 = vmax.f32 %v216, %v217
    %v219 = vrot.slane %v218, 1
    %v220 = vmax.f32 %v218, %v219
    %vm221 = vcmp.eq.f32.partialorder %v212, %v220
    %v222 = vsel %vm221, %v214, 8
    %v223 = vrot.slane %v222, 4
    %vm224 = vcmp.lt.s32.totalorder %v222, %v223
    %v225 = vsel %vm224, %v222, %v223
    %v226 = vrot.slane %v225, 2
    %vm227 = vcmp.lt.s32.totalorder %v225, %v226
    %v228 = vsel %vm227, %v225, %v226
    %v229 = vrot.slane %v228, 1
    %vm230 = vcmp.lt.s32.totalorder %v228, %v229
    %v231 = vsel %vm230, %v228, %v229
    %vm232 = vcmp.eq.s32.totalorder %v214, %v231
    %v233 = vsel %vm232, -inf, %v212
    %v234 = vrot.slane %v233, 4
    %v235 = vmax.f32 %v233, %v234
    %v236 = vrot.slane %v235, 2
    %v237 = vmax.f32 %v235, %v236
    %v238 = vrot.slane %v237, 1
    %v239 = vmax.f32 %v237, %v238
    %vm240 = vcmp.eq.f32.partialorder %v233, %v239
    %v241 = vsel %vm240, %v214, 8
    %v242 = vrot.slane %v241, 4
    %vm243 = vcmp.lt.s32.totalorder %v241, %v242
    %v244 = vsel %vm243, %v241, %v242
    %v245 = vrot.slane %v244, 2
    %vm246 = vcmp.lt.s32.totalorder %v244, %v245
    %v247 = vsel %vm246, %v244, %v245
    %v248 = vrot.slane %v247, 1
    %vm249 = vcmp.lt.s32.totalorder %v247, %v248
    %v250 = vsel %vm249, %v247, %v248
    %vm251 = vcmp.eq.s32.totalorder %v214, %v250
    %vm252 = vmor %vm232, %vm251
    %vm253 = vcmask 1040384
    %v254 = vsel %vm253, %v231, %v250
    %255 = vst [vmem:[#allocation6] sm:$0x3] %v254
    %v256 = vsel %vm252, %v212, -inf
    %v257 = vsub.f32 %v256, %v220
    %v258 = vmul.f32 %v257, 1.442695
    %v259 = vpow.pop %v258
    %v260 = vrot.slane %v259, 4
    %v261 = vadd.f32 %v259, %v260
    %v262 = vrot.slane %v261, 2
    %v263 = vadd.f32 %v261, %v262
    %v264 = vrot.slane %v263, 1
    %v265 = vadd.f32 %v263, %v264
    %v266 = vrcp.pop %v265
    %v267 = vmul.f32 %v259, %v266
    %268 = vst [vmem:[#allocation5] sm:$0xff] %v267
    // Predicated region
    $region22: #{tpu_custom_call.1} parent=1 // pred_check
      _
    $region23: #{tpu_custom_call.1} parent=1 // pred_check_branch
      %270 = sbr.rel (0) target = $region25
    $region24: #{tpu_custom_call.1} parent=1 // pred_region
      %s272 = ssub.s32 128, 128
      %273 = vsyncadd [#allocation4], %s272
      %s275 = sshll.u32 [#allocation5], 4
      %s276 = int_to_ptr.vmem [resolvable:$true] %s275
      %278 = dma.vmem_to_hbm [thread:$0]  %s276, 128, %s4, [#allocation4]
    $region25: #{tpu_custom_call.1} parent=1 // pred_fallthru
      _
    // Predicated region
    $region26: #{tpu_custom_call.1} parent=1 // pred_check
      _
    $region27: #{tpu_custom_call.1} parent=1 // pred_check_branch
      %280 = sbr.rel (0) target = $region29
    $region28: #{tpu_custom_call.1} parent=1 // pred_region
      %s282 = ssub.s32 32, 32
      %283 = vsyncadd [#allocation7], %s282
      %s285 = sshll.u32 [#allocation6], 4
      %s286 = int_to_ptr.vmem [resolvable:$true] %s285
      %288 = dma.vmem_to_hbm [thread:$0]  %s286, 32, %s5, [#allocation7]
    $region29: #{tpu_custom_call.1} parent=1 // pred_fallthru
      _
    // Predicated region
    $region30: #{tpu_custom_call.1} parent=1 // pred_check
      _
    $region31: #{tpu_custom_call.1} parent=1 // pred_check_branch
      %290 = sbr.rel (0) target = $region33
    $region32: #{tpu_custom_call.1} parent=1 // pred_region
      %291 = dma.done [#allocation4], 128
    $region33: #{tpu_custom_call.1} parent=1 // pred_fallthru
      _
    // Predicated region
    $region34: #{tpu_custom_call.1} parent=1 // pred_check
      _
    $region35: #{tpu_custom_call.1} parent=1 // pred_check_branch
      %293 = sbr.rel (0) target = $region37
    $region36: #{tpu_custom_call.1} parent=1 // pred_region
      %294 = dma.done [#allocation7], 32
    $region37: #{tpu_custom_call.1} parent=1 // pred_fallthru
      _
    %295 = vsyncpa [#allocation3], 1
    %296 = vsyncpa [#allocation4], 1
    %297 = vsyncpa [#allocation7], 1

</llo_original>
